<compile_context>
chip_gen: v5e
topology: v5e:2x2
jax: 0.10.0
libtpu: 0.0.40
codegen_flags: <defaults>
</compile_context>

<pallas_src>
import jax
import jax.numpy as jnp
from jax.experimental import pallas as pl
from jax.experimental.pallas import tpu as pltpu


def _round_up(x, m):
    return ((x + m - 1) // m) * m


def _vmem_limit_bytes():
    """Gate the scoped-VMEM limit on the chip: ~48 MiB on 64 MiB parts (v7x),
    up to 96 MiB on 128 MiB parts (v5e/v6e). Falls back to a v7x-safe value."""
    try:
        cap = int(getattr(pltpu.get_tpu_info(), "vmem_capacity_bytes"))
    except Exception:
        return 48 << 20
    return int(min(max(cap - (16 << 20), 32 << 20), 96 << 20))


def ffn_kernel(x_ref, w1_ref, b1_ref, w2_ref, b2_ref, w3_ref, b3_ref, o_ref):
    # x arrives as f32 (straight from HBM); cast to bf16 here so the cast hides
    # under the tile DMA. All accumulation / elementwise math stays f32.
    x = x_ref[...].astype(jnp.bfloat16)

    # Layer 1: Linear + LeakyReLU (negative_slope = 0.01, PyTorch default)
    h = jnp.dot(x, w1_ref[...], preferred_element_type=jnp.float32) + b1_ref[...]
    h = jnp.maximum(h, 0.01 * h)

    # Layer 2: Linear + LeakyReLU
    h = jnp.dot(h.astype(jnp.bfloat16), w2_ref[...],
                preferred_element_type=jnp.float32) + b2_ref[...]
    h = jnp.maximum(h, 0.01 * h)

    # Layer 3: Linear + Sigmoid (exp and approx reciprocal both go to the EUP)
    h = jnp.dot(h.astype(jnp.bfloat16), w3_ref[...],
                preferred_element_type=jnp.float32) + b3_ref[...]
    o_ref[...] = pl.reciprocal(1.0 + jnp.exp(-h), approx=True)


def ffn_forward(x, w1, b1, w2, b2, w3, b3, *, tm=2048):
    """x: [N, D] float32; w_i pre-transposed to (in, out); b_i shape (1, out)."""
    N, D = x.shape
    C = w3.shape[1]

    # --- Batch tiling ---------------------------------------------------------
    # Large tiles amortize the ~0.35 us per-grid-step overhead; cap so the grid
    # has >= 2 steps when possible (keeps both v7x TensorCores busy). No HBM
    # padding of x: grid = cdiv(N, TM), Pallas handles the ragged last block
    # (every op is row-wise, so garbage pad rows never pollute real rows).
    TM = max(8, min(tm, _round_up(pl.cdiv(N, 2), 8)))
    grid = (pl.cdiv(N, TM),)

    # --- dtypes: bf16 matmul weights (tiny, one-time cast), f32 biases --------
    w1b = w1.astype(jnp.bfloat16)
    w2b = w2.astype(jnp.bfloat16)
    w3b = w3.astype(jnp.bfloat16)
    b1f = b1.astype(jnp.float32)
    b2f = b2.astype(jnp.float32)
    b3f = b3.astype(jnp.float32)

    def resident(a):  # whole array, same block every grid step (stays in VMEM)
        return pl.BlockSpec(a.shape, lambda i: (0,) * a.ndim)

    out = pl.pallas_call(
        ffn_kernel,
        out_shape=jax.ShapeDtypeStruct((N, C), jnp.float32),
        grid_spec=pltpu.PrefetchScalarGridSpec(
            num_scalar_prefetch=0,
            grid=grid,
            in_specs=[
                pl.BlockSpec((TM, D), lambda i: (i, 0)),   # x: batch-tiled, f32
                resident(w1b), resident(b1f),
                resident(w2b), resident(b2f),
                resident(w3b), resident(b3f),
            ],
            # Unpadded output: block last dim == full array dim (legal). At tiny
            # num_classes the masked stores cost far less than a 128-lane pad.
            out_specs=pl.BlockSpec((TM, C), lambda i: (i, 0)),
        ),
        compiler_params=pltpu.CompilerParams(
            dimension_semantics=("parallel",),
            vmem_limit_bytes=_vmem_limit_bytes(),
        ),
    )(x.astype(jnp.float32), w1b, b1f, w2b, b2f, w3b, b3f)

    return out


def init_params(key, input_size, hidden_size_1, hidden_size_2, num_classes):
    """Deterministic init mimicking nn.Linear (uniform(-1/sqrt(fan_in), 1/sqrt(fan_in)))."""
    ks = jax.random.split(key, 6)

    def linear(kw, kb, fan_in, fan_out):
        bound = 1.0 / jnp.sqrt(fan_in)
        # PyTorch stores (out, in); keep (in, out) for the kernel.
        w = jax.random.uniform(kw, (fan_in, fan_out), jnp.float32, -bound, bound)
        b = jax.random.uniform(kb, (1, fan_out), jnp.float32, -bound, bound)
        return w, b

    w1, b1 = linear(ks[0], ks[1], input_size, hidden_size_1)
    w2, b2 = linear(ks[2], ks[3], hidden_size_1, hidden_size_2)
    w3, b3 = linear(ks[4], ks[5], hidden_size_2, num_classes)
    return w1, b1, w2, b2, w3, b3


if __name__ == "__main__":
    # Small shapes consistent with the module: N x D input, two hidden layers,
    # binary classes.
    N, input_size, hidden_1, hidden_2, num_classes = 8, 16, 32, 32, 2

    key = jax.random.PRNGKey(0)
    kx, kp = jax.random.split(key)
    x = jax.random.normal(kx, (N, input_size), jnp.float32)
    params = init_params(kp, input_size, hidden_1, hidden_2, num_classes)

    out = ffn_forward(x, *params)
    out = jax.block_until_ready(out)

    # Reference in plain f32 JAX (same math, no bf16 / approx reciprocal).
    w1, b1, w2, b2, w3, b3 = params
    h = x @ w1 + b1
    h = jnp.where(h > 0, h, 0.01 * h)
    h = h @ w2 + b2
    h = jnp.where(h > 0, h, 0.01 * h)
    ref = jax.nn.sigmoid(h @ w3 + b3)

    assert out.shape == (N, num_classes), f"bad shape {out.shape}"
    # bf16 matmul operands + approx EUP reciprocal -> relaxed tolerance.
    assert jnp.allclose(out, ref, atol=2e-2), "mismatch vs reference"

    print("KERNEL_OK")
</pallas_src>

<mosaic_0001>
module attributes {stable_mosaic.version = 11 : i64} {
  func.func @ffn_kernel(%arg0: i32, %arg1: memref<8x16xf32, #tpu.memory_space<vmem>>, %arg2: memref<16x32xbf16, #tpu.memory_space<vmem>>, %arg3: memref<1x32xf32, #tpu.memory_space<vmem>>, %arg4: memref<32x32xbf16, #tpu.memory_space<vmem>>, %arg5: memref<1x32xf32, #tpu.memory_space<vmem>>, %arg6: memref<32x2xbf16, #tpu.memory_space<vmem>>, %arg7: memref<1x2xf32, #tpu.memory_space<vmem>>, %arg8: memref<8x2xf32, #tpu.memory_space<vmem>>) attributes {dimension_semantics = [#tpu.dimension_semantics<parallel>], iteration_bounds = array<i64: 1>, scalar_prefetch = 0 : i64, scratch_operands = 0 : i64, tpu.core_type = #tpu.core_type<tc>, window_params = [{transform_indices = @transform_0, window_bounds = array<i64: 8, 16>}, {pipeline_mode = #tpu.pipeline_mode<synchronous>, transform_indices = @transform_1, window_bounds = array<i64: 16, 32>}, {pipeline_mode = #tpu.pipeline_mode<synchronous>, transform_indices = @transform_2, window_bounds = array<i64: 1, 32>}, {pipeline_mode = #tpu.pipeline_mode<synchronous>, transform_indices = @transform_3, window_bounds = array<i64: 32, 32>}, {pipeline_mode = #tpu.pipeline_mode<synchronous>, transform_indices = @transform_4, window_bounds = array<i64: 1, 32>}, {pipeline_mode = #tpu.pipeline_mode<synchronous>, transform_indices = @transform_5, window_bounds = array<i64: 32, 2>}, {pipeline_mode = #tpu.pipeline_mode<synchronous>, transform_indices = @transform_6, window_bounds = array<i64: 1, 2>}, {transform_indices = @transform_7, window_bounds = array<i64: 8, 2>}]} {
    %c0 = arith.constant 0 : index
    %c0_0 = arith.constant 0 : index
    %0 = vector.load %arg1[%c0, %c0_0] : memref<8x16xf32, #tpu.memory_space<vmem>>, vector<8x16xf32>
    %1 = arith.truncf %0 : vector<8x16xf32> to vector<8x16xbf16>
    %c0_1 = arith.constant 0 : index
    %c0_2 = arith.constant 0 : index
    %2 = vector.load %arg2[%c0_1, %c0_2] : memref<16x32xbf16, #tpu.memory_space<vmem>>, vector<16x32xbf16>
    %cst = arith.constant dense<0.000000e+00> : vector<8x32xf32>
    %3 = tpu.matmul %1, %2, %cst {dimension_numbers = #tpu.dot_dimension_numbers<[1], [0], [0], [1], [0, 0, 1, 1], [], []>} : vector<8x16xbf16>, vector<16x32xbf16>, vector<8x32xf32> -> vector<8x32xf32>
    %c0_3 = arith.constant 0 : index
    %c0_4 = arith.constant 0 : index
    %4 = vector.load %arg3[%c0_3, %c0_4] : memref<1x32xf32, #tpu.memory_space<vmem>>, vector<1x32xf32>
    %5 = vector.broadcast %4 : vector<1x32xf32> to vector<8x32xf32>
    %6 = arith.addf %3, %5 : vector<8x32xf32>
    %cst_5 = arith.constant 0.00999999977 : f32
    %7 = vector.broadcast %cst_5 : f32 to vector<8x32xf32>
    %8 = arith.mulf %7, %6 : vector<8x32xf32>
    %9 = arith.maximumf %6, %8 : vector<8x32xf32>
    %10 = arith.truncf %9 : vector<8x32xf32> to vector<8x32xbf16>
    %c0_6 = arith.constant 0 : index
    %c0_7 = arith.constant 0 : index
    %11 = vector.load %arg4[%c0_6, %c0_7] : memref<32x32xbf16, #tpu.memory_space<vmem>>, vector<32x32xbf16>
    %cst_8 = arith.constant dense<0.000000e+00> : vector<8x32xf32>
    %12 = tpu.matmul %10, %11, %cst_8 {dimension_numbers = #tpu.dot_dimension_numbers<[1], [0], [0], [1], [0, 0, 1, 1], [], []>} : vector<8x32xbf16>, vector<32x32xbf16>, vector<8x32xf32> -> vector<8x32xf32>
    %c0_9 = arith.constant 0 : index
    %c0_10 = arith.constant 0 : index
    %13 = vector.load %arg5[%c0_9, %c0_10] : memref<1x32xf32, #tpu.memory_space<vmem>>, vector<1x32xf32>
    %14 = vector.broadcast %13 : vector<1x32xf32> to vector<8x32xf32>
    %15 = arith.addf %12, %14 : vector<8x32xf32>
    %cst_11 = arith.constant 0.00999999977 : f32
    %16 = vector.broadcast %cst_11 : f32 to vector<8x32xf32>
    %17 = arith.mulf %16, %15 : vector<8x32xf32>
    %18 = arith.maximumf %15, %17 : vector<8x32xf32>
    %19 = arith.truncf %18 : vector<8x32xf32> to vector<8x32xbf16>
    %c0_12 = arith.constant 0 : index
    %c0_13 = arith.constant 0 : index
    %20 = vector.load %arg6[%c0_12, %c0_13] : memref<32x2xbf16, #tpu.memory_space<vmem>>, vector<32x2xbf16>
    %cst_14 = arith.constant dense<0.000000e+00> : vector<8x2xf32>
    %21 = tpu.matmul %19, %20, %cst_14 {dimension_numbers = #tpu.dot_dimension_numbers<[1], [0], [0], [1], [0, 0, 1, 1], [], []>} : vector<8x32xbf16>, vector<32x2xbf16>, vector<8x2xf32> -> vector<8x2xf32>
    %c0_15 = arith.constant 0 : index
    %c0_16 = arith.constant 0 : index
    %22 = vector.load %arg7[%c0_15, %c0_16] : memref<1x2xf32, #tpu.memory_space<vmem>>, vector<1x2xf32>
    %23 = vector.broadcast %22 : vector<1x2xf32> to vector<8x2xf32>
    %24 = arith.addf %21, %23 : vector<8x2xf32>
    %cst_17 = arith.constant 0.000000e+00 : f32
    %25 = vector.broadcast %cst_17 : f32 to vector<8x2xf32>
    %26 = arith.subf %25, %24 : vector<8x2xf32>
    %27 = math.exp %26 : vector<8x2xf32>
    %cst_18 = arith.constant 1.000000e+00 : f32
    %28 = vector.broadcast %cst_18 : f32 to vector<8x2xf32>
    %29 = arith.addf %28, %27 : vector<8x2xf32>
    %30 = tpu.reciprocal %29 {approx = true} : vector<8x2xf32> -> vector<8x2xf32>
    %c0_19 = arith.constant 0 : index
    %c0_20 = arith.constant 0 : index
    %31 = vector.load %arg8[%c0_19, %c0_20] : memref<8x2xf32, #tpu.memory_space<vmem>>, vector<8x2xf32>
    tpu.vector_store %arg8[%c0_19, %c0_20], %30 {strides = array<i32>} : memref<8x2xf32, #tpu.memory_space<vmem>>, vector<8x2xf32>,
    return
  }
  func.func @transform_0(%arg0: i32) -> (i32, i32) {
    %c0_i32 = arith.constant 0 : i32
    %c0_i32_0 = arith.constant 0 : i32
    return %arg0, %c0_i32 : i32, i32
  }
  func.func @transform_1(%arg0: i32) -> (i32, i32) {
    %c0_i32 = arith.constant 0 : i32
    %c0_i32_0 = arith.constant 0 : i32
    %c0_i32_1 = arith.constant 0 : i32
    return %c0_i32, %c0_i32_0 : i32, i32
  }
  func.func @transform_2(%arg0: i32) -> (i32, i32) {
    %c0_i32 = arith.constant 0 : i32
    %c0_i32_0 = arith.constant 0 : i32
    %c0_i32_1 = arith.constant 0 : i32
    return %c0_i32, %c0_i32_0 : i32, i32
  }
  func.func @transform_3(%arg0: i32) -> (i32, i32) {
    %c0_i32 = arith.constant 0 : i32
    %c0_i32_0 = arith.constant 0 : i32
    %c0_i32_1 = arith.constant 0 : i32
    return %c0_i32, %c0_i32_0 : i32, i32
  }
  func.func @transform_4(%arg0: i32) -> (i32, i32) {
    %c0_i32 = arith.constant 0 : i32
    %c0_i32_0 = arith.constant 0 : i32
    %c0_i32_1 = arith.constant 0 : i32
    return %c0_i32, %c0_i32_0 : i32, i32
  }
  func.func @transform_5(%arg0: i32) -> (i32, i32) {
    %c0_i32 = arith.constant 0 : i32
    %c0_i32_0 = arith.constant 0 : i32
    %c0_i32_1 = arith.constant 0 : i32
    return %c0_i32, %c0_i32_0 : i32, i32
  }
  func.func @transform_6(%arg0: i32) -> (i32, i32) {
    %c0_i32 = arith.constant 0 : i32
    %c0_i32_0 = arith.constant 0 : i32
    %c0_i32_1 = arith.constant 0 : i32
    return %c0_i32, %c0_i32_0 : i32, i32
  }
  func.func @transform_7(%arg0: i32) -> (i32, i32) {
    %c0_i32 = arith.constant 0 : i32
    %c0_i32_0 = arith.constant 0 : i32
    return %arg0, %c0_i32 : i32, i32
  }
}

</mosaic_0001>

<llo_original>
// kernel: tpu_custom_call.1
$region0: #{tpu_custom_call.1}
  #allocation0 [shape = 'u32[]', space=smem, size = 0x4, offset = 0x4, fixed_abs, tag = 'smem constant byte address 0x4 - core index']
  #allocation1 [shape = 'u32[72,128]{1,0:T(1,128)}', space=vmem, size = 0x9000, scoped, tag = 'internal scratch']
  %s0 = inlined_call_operand.hbm [shape: f32[8,16], index: 0, kind: input, shape index: {}]
  %s1 = inlined_call_operand.hbm [shape: bf16[16,32], index: 1, kind: input, shape index: {}]
  %s2 = inlined_call_operand.vmem [shape: f32[1,32], index: 2, kind: input, shape index: {}]
  %s3 = inlined_call_operand.vmem [shape: bf16[32,32], index: 3, kind: input, shape index: {}]
  %s4 = inlined_call_operand.vmem [shape: f32[1,32], index: 4, kind: input, shape index: {}]
  %s5 = inlined_call_operand.vmem [shape: bf16[32,2], index: 5, kind: input, shape index: {}]
  %s6 = inlined_call_operand.vmem [shape: f32[1,2], index: 6, kind: input, shape index: {}]
  %s7 = inlined_call_operand.vmem [shape: f32[8,2], index: 7, kind: output, shape index: {}]
  %s8 = sld [smem:[#allocation0]]
  $region46: #{tpu_custom_call.1} parent=0
    _
  %s10 = ssub.s32 1, %s8
  %s11 = scalar_select 0, %s10, %s8
  $region1: #{tpu_custom_call.1} parent=0
    #allocation2 [shape = 'u8[4096]{0}', space=vmem, size = 0x1000, scoped, tag = 'input window, operand 0, single buffered']
    #allocation3 [shape = 's32[1]{0}', space=sflag, size = 0x4, scoped, tag = 'scoped memory for tpu_custom_call.1']
    #allocation4 [shape = 'u8[4096]{0}', space=vmem, size = 0x1000, scoped, tag = 'input window, operand 1, single buffered']
    #allocation5 [shape = 's32[1]{0}', space=sflag, size = 0x4, scoped, tag = 'scoped memory for tpu_custom_call.1']
    %12 = vsyncpa [#allocation3], 0
    %13 = vsyncpa [#allocation5], 0
    // Predicated region
    $region2: #{tpu_custom_call.1} parent=1 // pred_check
      _
    $region3: #{tpu_custom_call.1} parent=1 // pred_check_branch
      %15 = sbr.rel (0) target = $region5
    $region4: #{tpu_custom_call.1} parent=1 // pred_region
      %17 = vsyncadd [#allocation3], 0
      %s19 = sshll.u32 %s0, 4
      %s20 = int_to_ptr.hbm [resolvable:$true] %s19
      %s21 = sshll.u32 [#allocation2], 4
      %s22 = int_to_ptr.vmem [resolvable:$true] %s21
      %24 = dma.hbm_to_vmem [thread:$0]  %s20, 128, %s22, [#allocation3]
    $region5: #{tpu_custom_call.1} parent=1 // pred_fallthru
      _
    // Predicated region
    $region6: #{tpu_custom_call.1} parent=1 // pred_check
      _
    $region7: #{tpu_custom_call.1} parent=1 // pred_check_branch
      %26 = sbr.rel (0) target = $region9
    $region8: #{tpu_custom_call.1} parent=1 // pred_region
      %28 = vsyncadd [#allocation5], 0
      %s29 = sshll.u32 %s1, 4
      %s30 = int_to_ptr.hbm [resolvable:$true] %s29
      %s31 = sshll.u32 [#allocation4], 4
      %s32 = int_to_ptr.vmem [resolvable:$true] %s31
      %37 = dma.hbm_to_vmem [thread:$0]  %s30, 128, %s32, [#allocation5], 64, 64, 4
    $region9: #{tpu_custom_call.1} parent=1 // pred_fallthru
      _
    // Predicated region
    $region10: #{tpu_custom_call.1} parent=1 // pred_check
      _
    $region11: #{tpu_custom_call.1} parent=1 // pred_check_branch
      %39 = sbr.rel (0) target = $region13
    $region12: #{tpu_custom_call.1} parent=1 // pred_region
      _
    $region13: #{tpu_custom_call.1} parent=1 // pred_fallthru
      _
    // Predicated region
    $region14: #{tpu_custom_call.1} parent=1 // pred_check
      _
    $region15: #{tpu_custom_call.1} parent=1 // pred_check_branch
      %41 = sbr.rel (0) target = $region17
    $region16: #{tpu_custom_call.1} parent=1 // pred_region
      _
    $region17: #{tpu_custom_call.1} parent=1 // pred_fallthru
      _
    // Predicated region
    $region18: #{tpu_custom_call.1} parent=1 // pred_check
      _
    $region19: #{tpu_custom_call.1} parent=1 // pred_check_branch
      %43 = sbr.rel (0) target = $region21
    $region20: #{tpu_custom_call.1} parent=1 // pred_region
      _
    $region21: #{tpu_custom_call.1} parent=1 // pred_fallthru
      _
    // Predicated region
    $region22: #{tpu_custom_call.1} parent=1 // pred_check
      _
    $region23: #{tpu_custom_call.1} parent=1 // pred_check_branch
      %45 = sbr.rel (0) target = $region25
    $region24: #{tpu_custom_call.1} parent=1 // pred_region
      _
    $region25: #{tpu_custom_call.1} parent=1 // pred_fallthru
      _
    // Predicated region
    $region26: #{tpu_custom_call.1} parent=1 // pred_check
      _
    $region27: #{tpu_custom_call.1} parent=1 // pred_check_branch
      %47 = sbr.rel (0) target = $region29
    $region28: #{tpu_custom_call.1} parent=1 // pred_region
      _
    $region29: #{tpu_custom_call.1} parent=1 // pred_fallthru
      _
    // Predicated region
    $region30: #{tpu_custom_call.1} parent=1 // pred_check
      _
    $region31: #{tpu_custom_call.1} parent=1 // pred_check_branch
      %49 = sbr.rel (0) target = $region33
    $region32: #{tpu_custom_call.1} parent=1 // pred_region
      %51 = dma.done [#allocation3], 128
    $region33: #{tpu_custom_call.1} parent=1 // pred_fallthru
      _
    // Predicated region
    $region34: #{tpu_custom_call.1} parent=1 // pred_check
      _
    $region35: #{tpu_custom_call.1} parent=1 // pred_check_branch
      %53 = sbr.rel (0) target = $region37
    $region36: #{tpu_custom_call.1} parent=1 // pred_region
      %55 = dma.done [#allocation5], 128
    $region37: #{tpu_custom_call.1} parent=1 // pred_fallthru
      _
    %v57 = vld [vmem:[#allocation2] sm:$0xff]
    %v58 = vpack.c.bf16 %v57, %v57
    %v59 = vld [vmem:[#allocation4] sm:$0xf]
    %v60 = vld [vmem:[#allocation4 + $0x4] sm:$0xf]
    %v61 = vld [vmem:[%s2] sm:$0x1]
    %v63 = vperm.slane %v61, 0
    %v67 = vunpack.c.l.b16 %v59
    %v68 = vunpack.c.l.b16 %v60
    %v69 = vpack.c.b16 %v68, %v67
    %vm71 = vcmask 130048
    %v73 = vsel %vm71, %v58, 0
    %75 = vmatpush.bf16.msra.mxu0 0
    %76 = vmatpush.bf16.msra.mxu0 0
    %77 = vmatpush.bf16.msra.mxu0 0
    %78 = vmatpush.bf16.msra.mxu0 0
    %79 = vmatpush.bf16.msra.mxu0 0
    %80 = vmatpush.bf16.msra.mxu0 0
    %81 = vmatpush.bf16.msra.mxu0 0
    %82 = vmatpush.bf16.msra.mxu0 %v69
    %83 = vmatmul.bf16.gmra.mxu0 %v73
    %v84 = vpop.f32.mrf.mxu0
    %v85 = vadd.f32 %v63, %v84
    %v86 = vpop.f32.mrf.mxu0
    %87 = vdwg.mxu0
    %v88 = vmul.f32 %v85, 0.01
    %v89 = vmax.f32 %v85, %v88
    %v90 = vpack.c.bf16 %v89, %v89
    %v91 = vld [vmem:[%s3] sm:$0xf]
    %v92 = vld [vmem:[%s3 + $0x4] sm:$0xf]
    %v93 = vld [vmem:[%s3 + $0x8] sm:$0xf]
    %v94 = vld [vmem:[%s3 + $0xc] sm:$0xf]
    %v95 = vld [vmem:[%s4] sm:$0x1]
    %v97 = vperm.slane %v95, 0
    %v103 = vunpack.c.l.b16 %v91
    %v104 = vunpack.c.l.b16 %v92
    %v105 = vunpack.c.l.b16 %v93
    %v106 = vunpack.c.l.b16 %v94
    %v107 = vpack.c.b16 %v104, %v103
    %v108 = vpack.c.b16 %v106, %v105
    %vm111 = vcmask 261120
    %v113 = vsel %vm111, %v90, 0
    %115 = vmatpush.bf16.msra.mxu0 0
    %116 = vmatpush.bf16.msra.mxu0 0
    %117 = vmatpush.bf16.msra.mxu0 0
    %118 = vmatpush.bf16.msra.mxu0 0
    %119 = vmatpush.bf16.msra.mxu0 0
    %120 = vmatpush.bf16.msra.mxu0 0
    %121 = vmatpush.bf16.msra.mxu0 %v108
    %122 = vmatpush.bf16.msra.mxu0 %v107
    %123 = vmatmul.bf16.gmra.mxu0 %v113
    %v124 = vpop.f32.mrf.mxu0
    %v125 = vadd.f32 %v97, %v124
    %v126 = vpop.f32.mrf.mxu0
    %127 = vdwg.mxu0
    %v128 = vmul.f32 %v125, 0.01
    %v129 = vmax.f32 %v125, %v128
    %v130 = vpack.c.bf16 %v129, %v129
    %v131 = vld [vmem:[%s5] sm:$0xf]
    %v132 = vld [vmem:[%s5 + $0x4] sm:$0xf]
    %v133 = vld [vmem:[%s5 + $0x8] sm:$0xf]
    %v134 = vld [vmem:[%s5 + $0xc] sm:$0xf]
    %v135 = vld [vmem:[%s6] sm:$0x1]
    %v137 = vperm.slane %v135, 0
    %v143 = vunpack.c.l.b16 %v131
    %v144 = vunpack.c.l.b16 %v132
    %v145 = vunpack.c.l.b16 %v133
    %v146 = vunpack.c.l.b16 %v134
    %v147 = vpack.c.b16 %v144, %v143
    %v148 = vpack.c.b16 %v146, %v145
    %v152 = vsel %vm111, %v130, 0
    %154 = vmatpush.bf16.msra.mxu0 0
    %155 = vmatpush.bf16.msra.mxu0 0
    %156 = vmatpush.bf16.msra.mxu0 0
    %157 = vmatpush.bf16.msra.mxu0 0
    %158 = vmatpush.bf16.msra.mxu0 0
    %159 = vmatpush.bf16.msra.mxu0 0
    %160 = vmatpush.bf16.msra.mxu0 %v148
    %161 = vmatpush.bf16.msra.mxu0 %v147
    %162 = vmatmul.bf16.gmra.mxu0 %v152
    %v163 = vpop.f32.mrf.mxu0
    %v164 = vadd.f32 %v137, %v163
    %v165 = vpop.f32.mrf.mxu0
    %166 = vdwg.mxu0
    %v167 = vsub.f32 0.0, %v164
    %v168 = vmul.f32 %v167, 1.442695
    %v169 = vpow.pop %v168
    %v170 = vadd.f32 %v169, 1.0
    %v171 = vrcp.pop %v170
    %vm172 = vcmask 15360
    %173 = vst.msk [vmem:[%s7] sm:$0xff] %vm172, %v171
    // Predicated region
    $region38: #{tpu_custom_call.1} parent=1 // pred_check
      _
    $region39: #{tpu_custom_call.1} parent=1 // pred_check_branch
      %175 = sbr.rel (0) target = $region41
    $region40: #{tpu_custom_call.1} parent=1 // pred_region
      _
    $region41: #{tpu_custom_call.1} parent=1 // pred_fallthru
      _
    // Predicated region
    $region42: #{tpu_custom_call.1} parent=1 // pred_check
      _
    $region43: #{tpu_custom_call.1} parent=1 // pred_check_branch
      %177 = sbr.rel (0) target = $region45
    $region44: #{tpu_custom_call.1} parent=1 // pred_region
      _
    $region45: #{tpu_custom_call.1} parent=1 // pred_fallthru
      _
    %178 = vsyncpa [#allocation3], 1
    %179 = vsyncpa [#allocation5], 1

</llo_original>
